<compile_context>
chip_gen: v7x
topology: tpu7x:2x2x1
jax: 0.10.0
libtpu: 0.0.40
codegen_flags: <defaults>
</compile_context>

<pallas_src>
import math

import jax
import jax.numpy as jnp
from jax.experimental import pallas as pl
from jax.experimental.pallas import tpu as pltpu

_LANES = 128
_SUBLANES = 8
_DEFAULT_BLOCK_BYTES = 4 << 20      # ~4 MiB / block; use ~8 MiB on v7x
_MIN_GRID_FOR_MEGACORE = 8          # keep enough tiles for 2-TC sharding (v7x)


def _temp_scale_kernel(inv_ref, x_ref, o_ref):
    # inv_ref: (1, 1) f32 scalar (1 / temperature) in SMEM, hoisted out of the
    # grid loop by the wrapper.  Body is one broadcast multiply per tile.
    inv = inv_ref[0, 0]
    o_ref[...] = (x_ref[...].astype(jnp.float32) * inv).astype(o_ref.dtype)


def temperature_scaling(logits: jax.Array, temperature: jax.Array, *,
                        block_bytes: int = _DEFAULT_BLOCK_BYTES,
                        donate_logits: bool = False) -> jax.Array:
    """Equivalent of TemperatureScaling.forward: logits / temperature.

    logits: arbitrary-shaped float array (typically (batch, num_classes)).
    temperature: shape (1,) parameter (like nn.Parameter(torch.ones(1) * 1.5)).
    block_bytes: target VMEM block size (4 MiB default; ~8 MiB pays off on v7x).
    donate_logits: alias the logits buffer to the output (caller must donate).
    """
    orig_shape = logits.shape
    dtype = logits.dtype
    n = math.prod(orig_shape)
    last = orig_shape[-1] if logits.ndim >= 1 else 1

    # ---- free (metadata-only) 2-D view: no pads, no output slicing ----------
    if logits.ndim >= 2 and last % _LANES == 0:
        rows, cols = n // last, last            # already lane-dense
    elif n % _LANES == 0:
        rows, cols = n // _LANES, _LANES        # lane-dense flat view
    else:
        # Keep the natural (leading, C) view; tail lanes are masked stores,
        # which is far cheaper than an extra pad + slice pass over HBM.
        rows, cols = (n // last if logits.ndim >= 2 else 1), last
    x2d = logits.reshape(rows, cols)

    # ---- tile rows: big blocks to amortize per-step overhead -----------------
    itemsize = jnp.dtype(dtype).itemsize
    row_bytes = max(cols * itemsize, 1)
    tb_target = max(_SUBLANES, (block_bytes // row_bytes) // _SUBLANES * _SUBLANES)

    if rows <= tb_target:
        tb = rows                               # single block == full array dims
    else:
        # Keep >= ~8 grid steps so megacore ("parallel") has work to split.
        tb_cap = max(_SUBLANES,
                     (rows // _MIN_GRID_FOR_MEGACORE) // _SUBLANES * _SUBLANES)
        tb = max(_SUBLANES, min(tb_target, tb_cap))

    grid = (pl.cdiv(rows, tb),)                 # partial last block handled by Pallas

    # Only raise the scoped-VMEM limit when the double-buffered blocks need it.
    vmem_needed = 4 * tb * cols * itemsize      # 2 buffers x (in + out)
    cp_kwargs = dict(dimension_semantics=("parallel",))
    if vmem_needed > (24 << 20):
        cp_kwargs["vmem_limit_bytes"] = int(vmem_needed + (8 << 20))
    compiler_params = pltpu.CompilerParams(**cp_kwargs)

    # Reciprocal once, in f32, in the wrapper (scalar op; not input pre-scaling).
    inv_t = (1.0 / temperature.astype(jnp.float32)).reshape(1, 1)

    out2d = pl.pallas_call(
        _temp_scale_kernel,
        out_shape=jax.ShapeDtypeStruct((rows, cols), dtype),
        grid=grid,
        in_specs=[
            pl.BlockSpec(memory_space=pltpu.SMEM),         # 1/temperature scalar
            pl.BlockSpec((tb, cols), lambda i: (i, 0)),    # logits row tile
        ],
        out_specs=pl.BlockSpec((tb, cols), lambda i: (i, 0)),
        compiler_params=compiler_params,
        input_output_aliases=({1: 0} if donate_logits else {}),
    )(inv_t, x2d)

    return out2d.reshape(orig_shape)


if __name__ == "__main__":
    key = jax.random.PRNGKey(0)

    # Deterministic parameter init, matching torch.ones(1) * 1.5
    temperature = jnp.ones((1,), dtype=jnp.float32) * 1.5

    # (batch, num_classes): small, single-block, lane-dense (n % 128 == 0) path.
    logits = jax.random.normal(key, (8, 16), dtype=jnp.float32)
    out = jax.block_until_ready(temperature_scaling(logits, temperature))
    ref = logits / temperature
    assert out.shape == logits.shape
    assert jnp.allclose(out, ref, atol=1e-6, rtol=1e-6), "mismatch (small)"

    # Multi-tile pipelined path with a partial last block (cdiv grid, no pad).
    k1, k2 = jax.random.split(jax.random.PRNGKey(1))
    logits2 = jax.random.normal(k1, (37, 128), dtype=jnp.float32)
    out2 = jax.block_until_ready(
        temperature_scaling(logits2, temperature, block_bytes=4 * 128 * 8))
    assert jnp.allclose(out2, logits2 / temperature, atol=1e-6, rtol=1e-6), \
        "mismatch (tiled / partial block)"

    # Non-128-aligned class count: no pad, no output slice, masked tail stores.
    logits3 = jax.random.normal(k2, (10, 7), dtype=jnp.float32)
    out3 = jax.block_until_ready(temperature_scaling(logits3, temperature))
    assert jnp.allclose(out3, logits3 / temperature, atol=1e-6, rtol=1e-6), \
        "mismatch (unaligned)"

    print("KERNEL_OK")
</pallas_src>

<mosaic_0001>
module attributes {stable_mosaic.version = 11 : i64} {
  func.func @_temp_scale_kernel(%arg0: i32, %arg1: memref<1x1xf32, #tpu.memory_space<smem>>, %arg2: memref<1x128xf32, #tpu.memory_space<vmem>>, %arg3: memref<1x128xf32, #tpu.memory_space<vmem>>) attributes {dimension_semantics = [#tpu.dimension_semantics<parallel>], iteration_bounds = array<i64: 1>, scalar_prefetch = 0 : i64, scratch_operands = 0 : i64, tpu.core_type = #tpu.core_type<tc>, window_params = [{transform_indices = @transform_0, window_bounds = array<i64: 1, 1>}, {transform_indices = @transform_1, window_bounds = array<i64: 1, 128>}, {transform_indices = @transform_2, window_bounds = array<i64: 1, 128>}]} {
    %c0 = arith.constant 0 : index
    %c0_0 = arith.constant 0 : index
    %0 = memref.load %arg1[%c0, %c0_0] : memref<1x1xf32, #tpu.memory_space<smem>>
    %c0_1 = arith.constant 0 : index
    %c0_2 = arith.constant 0 : index
    %1 = vector.load %arg2[%c0_1, %c0_2] : memref<1x128xf32, #tpu.memory_space<vmem>>, vector<1x128xf32>
    %2 = vector.broadcast %0 : f32 to vector<1x128xf32>
    %3 = arith.mulf %1, %2 : vector<1x128xf32>
    %c0_3 = arith.constant 0 : index
    %c0_4 = arith.constant 0 : index
    %4 = vector.load %arg3[%c0_3, %c0_4] : memref<1x128xf32, #tpu.memory_space<vmem>>, vector<1x128xf32>
    tpu.vector_store %arg3[%c0_3, %c0_4], %3 {strides = array<i32>} : memref<1x128xf32, #tpu.memory_space<vmem>>, vector<1x128xf32>,
    return
  }
  func.func @transform_0(%arg0: i32) -> (i32, i32) {
    %c0_i32 = arith.constant 0 : i32
    %c0_i32_0 = arith.constant 0 : i32
    %c0_i32_1 = arith.constant 0 : i32
    return %c0_i32, %c0_i32_0 : i32, i32
  }
  func.func @transform_1(%arg0: i32) -> (i32, i32) {
    %c0_i32 = arith.constant 0 : i32
    %c0_i32_0 = arith.constant 0 : i32
    return %arg0, %c0_i32 : i32, i32
  }
  func.func @transform_2(%arg0: i32) -> (i32, i32) {
    %c0_i32 = arith.constant 0 : i32
    %c0_i32_0 = arith.constant 0 : i32
    return %arg0, %c0_i32 : i32, i32
  }
}

</mosaic_0001>

<llo_original>
// kernel: tpu_custom_call.1
$region0: #{tpu_custom_call.1}
  #allocation0 [shape = 'u32[]', space=smem, size = 0x4, offset = 0x4, fixed_abs, tag = 'smem constant byte address 0x4 - core index']
  #allocation1 [shape = 'u32[144,128]{1,0:T(1,128)}', space=vmem, size = 0x12000, scoped, tag = 'internal scratch']
  #allocation2 [shape = 'f32[1,1]{1,0:T(1,128)S(6)}', space=smem, size = 0x200, scoped, tag = 'scoped memory for tpu_custom_call.1']
  %s0 = inlined_call_operand.<no memory space> [shape: f32[1,1], index: 0, kind: input, shape index: {}]
  %s1 = inlined_call_operand.vmem [shape: f32[1,128], index: 1, kind: input, shape index: {}]
  %s2 = inlined_call_operand.hbm [shape: f32[1,128], index: 2, kind: output, shape index: {}]
  %s3 = sld [smem:[#allocation0]]
  $region18: #{tpu_custom_call.1} parent=0
    _
  %s5 = ssub.s32 1, %s3
  %s6 = scalar_select 0, %s5, %s3
  %7 = sst [smem:[#allocation2]] %s0
  $region1: #{tpu_custom_call.1} parent=0
    #allocation3 [shape = 'u8[512]{0}', space=vmem, size = 0x400, scoped, tag = 'output window, operand 0, single buffered']
    #allocation4 [shape = 's32[1]{0}', space=sflag, size = 0x4, scoped, tag = 'scoped memory for tpu_custom_call.1']
    %8 = vsyncpa [#allocation4], 0
    // Predicated region
    $region2: #{tpu_custom_call.1} parent=1 // pred_check
      _
    $region3: #{tpu_custom_call.1} parent=1 // pred_check_branch
      %10 = sbr.rel (0) target = $region5
    $region4: #{tpu_custom_call.1} parent=1 // pred_region
      _
    $region5: #{tpu_custom_call.1} parent=1 // pred_fallthru
      _
    // Predicated region
    $region6: #{tpu_custom_call.1} parent=1 // pred_check
      _
    $region7: #{tpu_custom_call.1} parent=1 // pred_check_branch
      %12 = sbr.rel (0) target = $region9
    $region8: #{tpu_custom_call.1} parent=1 // pred_region
      _
    $region9: #{tpu_custom_call.1} parent=1 // pred_fallthru
      _
    %s13 = sld [smem:[#allocation2]]
    %v14 = vld [vmem:[%s1] sm:$0x1]
    %v15 = vstv %s13
    %v16 = vmul.f32 %v14, %v15
    %17 = vst [vmem:[#allocation3] sm:$0x1] %v16
    // Predicated region
    $region10: #{tpu_custom_call.1} parent=1 // pred_check
      _
    $region11: #{tpu_custom_call.1} parent=1 // pred_check_branch
      %19 = sbr.rel (0) target = $region13
    $region12: #{tpu_custom_call.1} parent=1 // pred_region
      %s21 = ssub.s32 16, 16
      %22 = vsyncadd [#allocation4], %s21
      %s24 = sshll.u32 [#allocation3], 4
      %s25 = int_to_ptr.vmem [resolvable:$true] %s24
      %27 = dma.vmem_to_hbm [thread:$0]  %s25, 16, %s2, [#allocation4]
    $region13: #{tpu_custom_call.1} parent=1 // pred_fallthru
      _
    // Predicated region
    $region14: #{tpu_custom_call.1} parent=1 // pred_check
      _
    $region15: #{tpu_custom_call.1} parent=1 // pred_check_branch
      %29 = sbr.rel (0) target = $region17
    $region16: #{tpu_custom_call.1} parent=1 // pred_region
      %30 = dma.done [#allocation4], 16
    $region17: #{tpu_custom_call.1} parent=1 // pred_fallthru
      _
    %31 = vsyncpa [#allocation4], 1

</llo_original>
